<compile_context>
chip_gen: v6e
topology: v6e:2x2x1
jax: 0.10.0
libtpu: 0.0.40
codegen_flags: <defaults>
</compile_context>

<pallas_src>
import functools

import jax
import jax.numpy as jnp
from jax.experimental import pallas as pl
from jax.experimental.pallas import tpu as pltpu

NUM_CLASSES = 10
BATCH_SIZE = 128  # hidden width of fc1 (constant from the training script)
H2, H3, H4 = 64, 8, 1

DEFAULT_BLOCK_ROWS = 2048  # batch tile on the lane axis; multiple of 128


def _round_up(a, b):
    return (a + b - 1) // b * b


def attack_mlp_kernel(xT_ref,
                      w1_ref, b1_ref,
                      w2_ref, b2_ref,
                      w3_ref, b3_ref,
                      w4_ref, b4_ref,
                      o_ref, *, compute_dtype):
    """Feature-major fused MLP: batch lives on the lane axis, layers are W @ X."""
    x = xT_ref[...]                                                   # (10, TM)

    # fc1 + ReLU  (MXU, f32 accumulate)
    h = jnp.dot(w1_ref[...], x, preferred_element_type=jnp.float32)   # (128, TM)
    h = jnp.maximum(h + b1_ref[...], 0.0).astype(compute_dtype)

    # fc2 + ReLU
    h = jnp.dot(w2_ref[...], h, preferred_element_type=jnp.float32)   # (64, TM)
    h = jnp.maximum(h + b2_ref[...], 0.0).astype(compute_dtype)

    # fc3 + ReLU
    h = jnp.dot(w3_ref[...], h, preferred_element_type=jnp.float32)   # (8, TM)
    h = jnp.maximum(h + b3_ref[...], 0.0)                             # f32

    # fc4 (8 -> 1) on VPU/XLU: elementwise multiply + sublane reduce, no MXU.
    y = jnp.sum(h * w4_ref[...], axis=0, keepdims=True) + b4_ref[...]  # (1, TM)

    # Sigmoid on the EUP, lane-dense store.
    o_ref[...] = jax.nn.sigmoid(y)


def attack_model_forward(x, params, *, block_rows=DEFAULT_BLOCK_ROWS,
                         compute_dtype=jnp.bfloat16):
    """x: (N, NUM_CLASSES) float32. params: dict with w1..w4, b1..b4.

    Weights are stored PyTorch-style (out_features, in_features); biases are
    (out_features, 1); w4 is pre-transposed to (8, 1) and b4 is (1, 1).
    Returns (N, 1) float32 probabilities.
    """
    n = x.shape[0]
    # Tile size: large for throughput, but never bigger than the (padded) batch.
    tm = min(block_rows, _round_up(max(n, 1), 128))
    n_pad = _round_up(n, tm)
    grid = (n_pad // tm,)

    # Pad the batch to a tile multiple, cast to bf16, go feature-major (lane-dense).
    x_pad = jnp.pad(x, ((0, n_pad - n), (0, 0)))
    xT = x_pad.astype(compute_dtype).T                     # (NUM_CLASSES, n_pad)

    # MXU operands in bf16; fc4 weight/biases stay f32 (VPU path).
    w1 = params["w1"].astype(compute_dtype)                # (128, 10)
    w2 = params["w2"].astype(compute_dtype)                # (64, 128)
    w3 = params["w3"].astype(compute_dtype)                # (8, 64)
    w4 = params["w4"]                                      # (8, 1)  f32
    b1, b2, b3, b4 = params["b1"], params["b2"], params["b3"], params["b4"]

    def whole(a):  # full-array block, constant index -> resident across the grid
        return pl.BlockSpec(a.shape, lambda i: (0, 0))

    in_specs = [
        pl.BlockSpec((NUM_CLASSES, tm), lambda i: (0, i)),  # x tile (pipelined)
        whole(w1), whole(b1),
        whole(w2), whole(b2),
        whole(w3), whole(b3),
        whole(w4), whole(b4),
    ]
    out_specs = pl.BlockSpec((1, tm), lambda i: (0, i))     # lane-dense output

    flops = 2 * n_pad * (NUM_CLASSES * BATCH_SIZE + BATCH_SIZE * H2 + H2 * H3 + H3 * H4)
    bytes_accessed = (xT.size * xT.dtype.itemsize
                      + sum(a.size * a.dtype.itemsize
                            for a in (w1, b1, w2, b2, w3, b3, w4, b4))
                      + n_pad * 4)

    kernel = functools.partial(attack_mlp_kernel, compute_dtype=compute_dtype)

    out = pl.pallas_call(
        kernel,
        grid=grid,
        in_specs=in_specs,
        out_specs=out_specs,
        out_shape=jax.ShapeDtypeStruct((1, n_pad), jnp.float32),
        compiler_params=pltpu.CompilerParams(
            dimension_semantics=("parallel",)),
        cost_estimate=pl.CostEstimate(
            flops=flops, transcendentals=n_pad, bytes_accessed=bytes_accessed),
    )(xT, w1, b1, w2, b2, w3, b3, w4, b4)

    return out[0, :n].reshape(n, 1)


def init_params(key):
    """PyTorch-style init U(-1/sqrt(fan_in), 1/sqrt(fan_in)).

    Weights stored as (out_features, in_features) (nn.Linear layout); biases as
    (out_features, 1).  fc4's weight is pre-transposed to (8, 1) so the kernel's
    VPU reduction needs no in-kernel reshape.
    """
    layer_dims = [(NUM_CLASSES, BATCH_SIZE), (BATCH_SIZE, H2), (H2, H3), (H3, H4)]
    params = {}
    for i, (fan_in, fan_out) in enumerate(layer_dims, start=1):
        key, kw, kb = jax.random.split(key, 3)
        bound = 1.0 / (float(fan_in) ** 0.5)
        params[f"w{i}"] = jax.random.uniform(
            kw, (fan_out, fan_in), jnp.float32, minval=-bound, maxval=bound)
        params[f"b{i}"] = jax.random.uniform(
            kb, (fan_out, 1), jnp.float32, minval=-bound, maxval=bound)
    params["w4"] = params["w4"].T  # (1, 8) -> (8, 1)
    return params


def reference_forward(x, params, compute_dtype=jnp.bfloat16):
    """Pure-JAX reference mirroring the kernel's dtype path."""
    cd = compute_dtype
    xT = x.astype(cd).T
    h = jnp.dot(params["w1"].astype(cd), xT, preferred_element_type=jnp.float32)
    h = jnp.maximum(h + params["b1"], 0.0).astype(cd)
    h = jnp.dot(params["w2"].astype(cd), h, preferred_element_type=jnp.float32)
    h = jnp.maximum(h + params["b2"], 0.0).astype(cd)
    h = jnp.dot(params["w3"].astype(cd), h, preferred_element_type=jnp.float32)
    h = jnp.maximum(h + params["b3"], 0.0)
    y = jnp.sum(h * params["w4"], axis=0, keepdims=True) + params["b4"]
    return jax.nn.sigmoid(y).reshape(-1, 1)


if __name__ == "__main__":
    key = jax.random.PRNGKey(0)
    key, kx = jax.random.split(key)

    n = 8  # small example batch (not a multiple of 128 -> exercises padding)
    x = jax.random.normal(kx, (n, NUM_CLASSES), jnp.float32)
    params = init_params(key)

    out = attack_model_forward(x, params)
    out = jax.block_until_ready(out)
    assert out.shape == (n, 1)

    ref = reference_forward(x, params)
    assert jnp.allclose(out, ref, atol=1e-3, rtol=1e-3), (out, ref)

    print("KERNEL_OK")
</pallas_src>

<mosaic_0001>
module attributes {stable_mosaic.version = 11 : i64} {
  func.func @attack_mlp_kernel(%arg0: i32, %arg1: memref<10x128xbf16, #tpu.memory_space<vmem>>, %arg2: memref<128x10xbf16, #tpu.memory_space<vmem>>, %arg3: memref<128x1xf32, #tpu.memory_space<vmem>>, %arg4: memref<64x128xbf16, #tpu.memory_space<vmem>>, %arg5: memref<64x1xf32, #tpu.memory_space<vmem>>, %arg6: memref<8x64xbf16, #tpu.memory_space<vmem>>, %arg7: memref<8x1xf32, #tpu.memory_space<vmem>>, %arg8: memref<8x1xf32, #tpu.memory_space<vmem>>, %arg9: memref<1x1xf32, #tpu.memory_space<vmem>>, %arg10: memref<1x128xf32, #tpu.memory_space<vmem>>) attributes {dimension_semantics = [#tpu.dimension_semantics<parallel>], iteration_bounds = array<i64: 1>, scalar_prefetch = 0 : i64, scratch_operands = 0 : i64, tpu.core_type = #tpu.core_type<tc>, window_params = [{transform_indices = @transform_0, window_bounds = array<i64: 10, 128>}, {pipeline_mode = #tpu.pipeline_mode<synchronous>, transform_indices = @transform_1, window_bounds = array<i64: 128, 10>}, {pipeline_mode = #tpu.pipeline_mode<synchronous>, transform_indices = @transform_2, window_bounds = array<i64: 128, 1>}, {pipeline_mode = #tpu.pipeline_mode<synchronous>, transform_indices = @transform_3, window_bounds = array<i64: 64, 128>}, {pipeline_mode = #tpu.pipeline_mode<synchronous>, transform_indices = @transform_4, window_bounds = array<i64: 64, 1>}, {pipeline_mode = #tpu.pipeline_mode<synchronous>, transform_indices = @transform_5, window_bounds = array<i64: 8, 64>}, {pipeline_mode = #tpu.pipeline_mode<synchronous>, transform_indices = @transform_6, window_bounds = array<i64: 8, 1>}, {pipeline_mode = #tpu.pipeline_mode<synchronous>, transform_indices = @transform_7, window_bounds = array<i64: 8, 1>}, {pipeline_mode = #tpu.pipeline_mode<synchronous>, transform_indices = @transform_8, window_bounds = array<i64: 1, 1>}, {transform_indices = @transform_9, window_bounds = array<i64: 1, 128>}]} {
    %c0 = arith.constant 0 : index
    %c0_0 = arith.constant 0 : index
    %0 = vector.load %arg1[%c0, %c0_0] : memref<10x128xbf16, #tpu.memory_space<vmem>>, vector<10x128xbf16>
    %c0_1 = arith.constant 0 : index
    %c0_2 = arith.constant 0 : index
    %1 = vector.load %arg2[%c0_1, %c0_2] : memref<128x10xbf16, #tpu.memory_space<vmem>>, vector<128x10xbf16>
    %cst = arith.constant dense<0.000000e+00> : vector<128x128xf32>
    %2 = tpu.matmul %1, %0, %cst {dimension_numbers = #tpu.dot_dimension_numbers<[1], [0], [0], [1], [0, 0, 1, 1], [], []>} : vector<128x10xbf16>, vector<10x128xbf16>, vector<128x128xf32> -> vector<128x128xf32>
    %c0_3 = arith.constant 0 : index
    %c0_4 = arith.constant 0 : index
    %3 = vector.load %arg3[%c0_3, %c0_4] : memref<128x1xf32, #tpu.memory_space<vmem>>, vector<128x1xf32>
    %4 = vector.broadcast %3 : vector<128x1xf32> to vector<128x128xf32>
    %5 = arith.addf %2, %4 : vector<128x128xf32>
    %cst_5 = arith.constant 0.000000e+00 : f32
    %6 = vector.broadcast %cst_5 : f32 to vector<128x128xf32>
    %7 = arith.maximumf %5, %6 : vector<128x128xf32>
    %8 = arith.truncf %7 : vector<128x128xf32> to vector<128x128xbf16>
    %c0_6 = arith.constant 0 : index
    %c0_7 = arith.constant 0 : index
    %9 = vector.load %arg4[%c0_6, %c0_7] : memref<64x128xbf16, #tpu.memory_space<vmem>>, vector<64x128xbf16>
    %cst_8 = arith.constant dense<0.000000e+00> : vector<64x128xf32>
    %10 = tpu.matmul %9, %8, %cst_8 {dimension_numbers = #tpu.dot_dimension_numbers<[1], [0], [0], [1], [0, 0, 1, 1], [], []>} : vector<64x128xbf16>, vector<128x128xbf16>, vector<64x128xf32> -> vector<64x128xf32>
    %c0_9 = arith.constant 0 : index
    %c0_10 = arith.constant 0 : index
    %11 = vector.load %arg5[%c0_9, %c0_10] : memref<64x1xf32, #tpu.memory_space<vmem>>, vector<64x1xf32>
    %12 = vector.broadcast %11 : vector<64x1xf32> to vector<64x128xf32>
    %13 = arith.addf %10, %12 : vector<64x128xf32>
    %cst_11 = arith.constant 0.000000e+00 : f32
    %14 = vector.broadcast %cst_11 : f32 to vector<64x128xf32>
    %15 = arith.maximumf %13, %14 : vector<64x128xf32>
    %16 = arith.truncf %15 : vector<64x128xf32> to vector<64x128xbf16>
    %c0_12 = arith.constant 0 : index
    %c0_13 = arith.constant 0 : index
    %17 = vector.load %arg6[%c0_12, %c0_13] : memref<8x64xbf16, #tpu.memory_space<vmem>>, vector<8x64xbf16>
    %cst_14 = arith.constant dense<0.000000e+00> : vector<8x128xf32>
    %18 = tpu.matmul %17, %16, %cst_14 {dimension_numbers = #tpu.dot_dimension_numbers<[1], [0], [0], [1], [0, 0, 1, 1], [], []>} : vector<8x64xbf16>, vector<64x128xbf16>, vector<8x128xf32> -> vector<8x128xf32>
    %c0_15 = arith.constant 0 : index
    %c0_16 = arith.constant 0 : index
    %19 = vector.load %arg7[%c0_15, %c0_16] : memref<8x1xf32, #tpu.memory_space<vmem>>, vector<8x1xf32>
    %20 = vector.broadcast %19 : vector<8x1xf32> to vector<8x128xf32>
    %21 = arith.addf %18, %20 : vector<8x128xf32>
    %cst_17 = arith.constant 0.000000e+00 : f32
    %22 = vector.broadcast %cst_17 : f32 to vector<8x128xf32>
    %23 = arith.maximumf %21, %22 : vector<8x128xf32>
    %c0_18 = arith.constant 0 : index
    %c0_19 = arith.constant 0 : index
    %24 = vector.load %arg8[%c0_18, %c0_19] : memref<8x1xf32, #tpu.memory_space<vmem>>, vector<8x1xf32>
    %25 = vector.broadcast %24 : vector<8x1xf32> to vector<8x128xf32>
    %26 = arith.mulf %23, %25 : vector<8x128xf32>
    %cst_20 = arith.constant dense<0.000000e+00> : vector<128xf32>
    %27 = vector.multi_reduction <add>, %26, %cst_20 [0] : vector<8x128xf32> to vector<128xf32>
    %28 = vector.shape_cast %27 : vector<128xf32> to vector<1x128xf32>
    %c0_21 = arith.constant 0 : index
    %c0_22 = arith.constant 0 : index
    %29 = vector.load %arg9[%c0_21, %c0_22] : memref<1x1xf32, #tpu.memory_space<vmem>>, vector<1x1xf32>
    %30 = vector.broadcast %29 : vector<1x1xf32> to vector<1x128xf32>
    %31 = arith.addf %28, %30 : vector<1x128xf32>
    %32 = arith.negf %31 : vector<1x128xf32>
    %33 = math.exp %32 : vector<1x128xf32>
    %cst_23 = arith.constant 1.000000e+00 : f32
    %34 = vector.broadcast %cst_23 : f32 to vector<1x128xf32>
    %35 = arith.addf %34, %33 : vector<1x128xf32>
    %36 = arith.divf %34, %35 : vector<1x128xf32>
    %c0_24 = arith.constant 0 : index
    %c0_25 = arith.constant 0 : index
    %37 = vector.load %arg10[%c0_24, %c0_25] : memref<1x128xf32, #tpu.memory_space<vmem>>, vector<1x128xf32>
    tpu.vector_store %arg10[%c0_24, %c0_25], %36 {strides = array<i32>} : memref<1x128xf32, #tpu.memory_space<vmem>>, vector<1x128xf32>,
    return
  }
  func.func @transform_0(%arg0: i32) -> (i32, i32) {
    %c0_i32 = arith.constant 0 : i32
    %c0_i32_0 = arith.constant 0 : i32
    return %c0_i32, %arg0 : i32, i32
  }
  func.func @transform_1(%arg0: i32) -> (i32, i32) {
    %c0_i32 = arith.constant 0 : i32
    %c0_i32_0 = arith.constant 0 : i32
    %c0_i32_1 = arith.constant 0 : i32
    return %c0_i32, %c0_i32_0 : i32, i32
  }
  func.func @transform_2(%arg0: i32) -> (i32, i32) {
    %c0_i32 = arith.constant 0 : i32
    %c0_i32_0 = arith.constant 0 : i32
    %c0_i32_1 = arith.constant 0 : i32
    return %c0_i32, %c0_i32_0 : i32, i32
  }
  func.func @transform_3(%arg0: i32) -> (i32, i32) {
    %c0_i32 = arith.constant 0 : i32
    %c0_i32_0 = arith.constant 0 : i32
    %c0_i32_1 = arith.constant 0 : i32
    return %c0_i32, %c0_i32_0 : i32, i32
  }
  func.func @transform_4(%arg0: i32) -> (i32, i32) {
    %c0_i32 = arith.constant 0 : i32
    %c0_i32_0 = arith.constant 0 : i32
    %c0_i32_1 = arith.constant 0 : i32
    return %c0_i32, %c0_i32_0 : i32, i32
  }
  func.func @transform_5(%arg0: i32) -> (i32, i32) {
    %c0_i32 = arith.constant 0 : i32
    %c0_i32_0 = arith.constant 0 : i32
    %c0_i32_1 = arith.constant 0 : i32
    return %c0_i32, %c0_i32_0 : i32, i32
  }
  func.func @transform_6(%arg0: i32) -> (i32, i32) {
    %c0_i32 = arith.constant 0 : i32
    %c0_i32_0 = arith.constant 0 : i32
    %c0_i32_1 = arith.constant 0 : i32
    return %c0_i32, %c0_i32_0 : i32, i32
  }
  func.func @transform_7(%arg0: i32) -> (i32, i32) {
    %c0_i32 = arith.constant 0 : i32
    %c0_i32_0 = arith.constant 0 : i32
    %c0_i32_1 = arith.constant 0 : i32
    return %c0_i32, %c0_i32_0 : i32, i32
  }
  func.func @transform_8(%arg0: i32) -> (i32, i32) {
    %c0_i32 = arith.constant 0 : i32
    %c0_i32_0 = arith.constant 0 : i32
    %c0_i32_1 = arith.constant 0 : i32
    return %c0_i32, %c0_i32_0 : i32, i32
  }
  func.func @transform_9(%arg0: i32) -> (i32, i32) {
    %c0_i32 = arith.constant 0 : i32
    %c0_i32_0 = arith.constant 0 : i32
    return %c0_i32, %arg0 : i32, i32
  }
}

</mosaic_0001>

<llo_original>
// kernel: tpu_custom_call.1
$region0: #{tpu_custom_call.1}
  #allocation0 [shape = 'u32[]', space=smem, size = 0x4, offset = 0x4, fixed_abs, tag = 'smem constant byte address 0x4 - core index']
  #allocation1 [shape = 'u32[144,128]{1,0:T(1,128)}', space=vmem, size = 0x12000, scoped, tag = 'internal scratch']
  #allocation2 [shape = 'f32[1,1]{1,0:T(1,128)S(1)}', space=vmem, size = 0x200, scoped, tag = 'scoped memory for tpu_custom_call.1']
  %s0 = inlined_call_operand.vmem [shape: bf16[10,128], index: 0, kind: input, shape index: {}]
  %s1 = inlined_call_operand.vmem [shape: bf16[128,10], index: 1, kind: input, shape index: {}]
  %s2 = inlined_call_operand.vmem [shape: f32[128,1], index: 2, kind: input, shape index: {}]
  %s3 = inlined_call_operand.vmem [shape: bf16[64,128], index: 3, kind: input, shape index: {}]
  %s4 = inlined_call_operand.vmem [shape: f32[64,1], index: 4, kind: input, shape index: {}]
  %s5 = inlined_call_operand.vmem [shape: bf16[8,64], index: 5, kind: input, shape index: {}]
  %s6 = inlined_call_operand.vmem [shape: f32[8,1], index: 6, kind: input, shape index: {}]
  %s7 = inlined_call_operand.vmem [shape: f32[8,1], index: 7, kind: input, shape index: {}]
  %s8 = inlined_call_operand.<no memory space> [shape: f32[1,1], index: 8, kind: input, shape index: {}]
  %s9 = inlined_call_operand.hbm [shape: f32[1,128], index: 9, kind: output, shape index: {}]
  %s10 = sld [smem:[#allocation0]]
  $region46: #{tpu_custom_call.1} parent=0
    _
  %s12 = ssub.s32 1, %s10
  %s13 = scalar_select 0, %s12, %s10
  %v14 = vstv %s8
  %15 = vst [vmem:[#allocation2] sm:$0x1] %v14
  $region1: #{tpu_custom_call.1} parent=0
    #allocation3 [shape = 'u8[512]{0}', space=vmem, size = 0x400, scoped, tag = 'output window, operand 0, single buffered']
    #allocation4 [shape = 's32[1]{0}', space=sflag, size = 0x4, scoped, tag = 'scoped memory for tpu_custom_call.1']
    %16 = vsyncpa [#allocation4], 0
    // Predicated region
    $region2: #{tpu_custom_call.1} parent=1 // pred_check
      _
    $region3: #{tpu_custom_call.1} parent=1 // pred_check_branch
      %18 = sbr.rel (0) target = $region5
    $region4: #{tpu_custom_call.1} parent=1 // pred_region
      _
    $region5: #{tpu_custom_call.1} parent=1 // pred_fallthru
      _
    // Predicated region
    $region6: #{tpu_custom_call.1} parent=1 // pred_check
      _
    $region7: #{tpu_custom_call.1} parent=1 // pred_check_branch
      %20 = sbr.rel (0) target = $region9
    $region8: #{tpu_custom_call.1} parent=1 // pred_region
      _
    $region9: #{tpu_custom_call.1} parent=1 // pred_fallthru
      _
    // Predicated region
    $region10: #{tpu_custom_call.1} parent=1 // pred_check
      _
    $region11: #{tpu_custom_call.1} parent=1 // pred_check_branch
      %22 = sbr.rel (0) target = $region13
    $region12: #{tpu_custom_call.1} parent=1 // pred_region
      _
    $region13: #{tpu_custom_call.1} parent=1 // pred_fallthru
      _
    // Predicated region
    $region14: #{tpu_custom_call.1} parent=1 // pred_check
      _
    $region15: #{tpu_custom_call.1} parent=1 // pred_check_branch
      %24 = sbr.rel (0) target = $region17
    $region16: #{tpu_custom_call.1} parent=1 // pred_region
      _
    $region17: #{tpu_custom_call.1} parent=1 // pred_fallthru
      _
    // Predicated region
    $region18: #{tpu_custom_call.1} parent=1 // pred_check
      _
    $region19: #{tpu_custom_call.1} parent=1 // pred_check_branch
      %26 = sbr.rel (0) target = $region21
    $region20: #{tpu_custom_call.1} parent=1 // pred_region
      _
    $region21: #{tpu_custom_call.1} parent=1 // pred_fallthru
      _
    // Predicated region
    $region22: #{tpu_custom_call.1} parent=1 // pred_check
      _
    $region23: #{tpu_custom_call.1} parent=1 // pred_check_branch
      %28 = sbr.rel (0) target = $region25
    $region24: #{tpu_custom_call.1} parent=1 // pred_region
      _
    $region25: #{tpu_custom_call.1} parent=1 // pred_fallthru
      _
    // Predicated region
    $region26: #{tpu_custom_call.1} parent=1 // pred_check
      _
    $region27: #{tpu_custom_call.1} parent=1 // pred_check_branch
      %30 = sbr.rel (0) target = $region29
    $region28: #{tpu_custom_call.1} parent=1 // pred_region
      _
    $region29: #{tpu_custom_call.1} parent=1 // pred_fallthru
      _
    // Predicated region
    $region30: #{tpu_custom_call.1} parent=1 // pred_check
      _
    $region31: #{tpu_custom_call.1} parent=1 // pred_check_branch
      %32 = sbr.rel (0) target = $region33
    $region32: #{tpu_custom_call.1} parent=1 // pred_region
      _
    $region33: #{tpu_custom_call.1} parent=1 // pred_fallthru
      _
    // Predicated region
    $region34: #{tpu_custom_call.1} parent=1 // pred_check
      _
    $region35: #{tpu_custom_call.1} parent=1 // pred_check_branch
      %34 = sbr.rel (0) target = $region37
    $region36: #{tpu_custom_call.1} parent=1 // pred_region
      _
    $region37: #{tpu_custom_call.1} parent=1 // pred_fallthru
      _
    %v36 = vld [vmem:[%s0] sm:$0xf]
    %v37 = vld [vmem:[%s0 + $0x4] sm:$0x1]
    %v38 = vld [vmem:[%s1] sm:$0xf]
    %v39 = vld [vmem:[%s1 + $0x4] sm:$0xf]
    %v40 = vld [vmem:[%s1 + $0x8] sm:$0xf]
    %v41 = vld [vmem:[%s1 + $0xc] sm:$0xf]
    %v42 = vld [vmem:[%s1 + $0x10] sm:$0xf]
    %v43 = vld [vmem:[%s1 + $0x14] sm:$0xf]
    %v44 = vld [vmem:[%s1 + $0x18] sm:$0xf]
    %v45 = vld [vmem:[%s1 + $0x1c] sm:$0xf]
    %v46 = vld [vmem:[%s1 + $0x20] sm:$0xf]
    %v47 = vld [vmem:[%s1 + $0x24] sm:$0xf]
    %v48 = vld [vmem:[%s1 + $0x28] sm:$0xf]
    %v49 = vld [vmem:[%s1 + $0x2c] sm:$0xf]
    %v50 = vld [vmem:[%s1 + $0x30] sm:$0xf]
    %v51 = vld [vmem:[%s1 + $0x34] sm:$0xf]
    %v52 = vld [vmem:[%s1 + $0x38] sm:$0xf]
    %v53 = vld [vmem:[%s1 + $0x3c] sm:$0xf]
    %v54 = vld [vmem:[%s2] sm:$0xff]
    %v55 = vld [vmem:[%s2 + $0x8] sm:$0xff]
    %v56 = vld [vmem:[%s2 + $0x10] sm:$0xff]
    %v57 = vld [vmem:[%s2 + $0x18] sm:$0xff]
    %v58 = vld [vmem:[%s2 + $0x20] sm:$0xff]
    %v59 = vld [vmem:[%s2 + $0x28] sm:$0xff]
    %v60 = vld [vmem:[%s2 + $0x30] sm:$0xff]
    %v61 = vld [vmem:[%s2 + $0x38] sm:$0xff]
    %v62 = vld [vmem:[%s2 + $0x40] sm:$0xff]
    %v63 = vld [vmem:[%s2 + $0x48] sm:$0xff]
    %v64 = vld [vmem:[%s2 + $0x50] sm:$0xff]
    %v65 = vld [vmem:[%s2 + $0x58] sm:$0xff]
    %v66 = vld [vmem:[%s2 + $0x60] sm:$0xff]
    %v67 = vld [vmem:[%s2 + $0x68] sm:$0xff]
    %v68 = vld [vmem:[%s2 + $0x70] sm:$0xff]
    %v69 = vld [vmem:[%s2 + $0x78] sm:$0xff]
    %71 = vset.pattern.permute.xlu0 0
    %72 = vperm.xlu0 %71, %v54
    %v73 = vpop.permute.xlu0 %72
    %76 = vset.pattern.permute.xlu0 0
    %77 = vperm.xlu0 %76, %v55
    %v78 = vpop.permute.xlu0 %77
    %81 = vset.pattern.permute.xlu0 0
    %82 = vperm.xlu0 %81, %v56
    %v83 = vpop.permute.xlu0 %82
    %86 = vset.pattern.permute.xlu0 0
    %87 = vperm.xlu0 %86, %v57
    %v88 = vpop.permute.xlu0 %87
    %91 = vset.pattern.permute.xlu0 0
    %92 = vperm.xlu0 %91, %v58
    %v93 = vpop.permute.xlu0 %92
    %96 = vset.pattern.permute.xlu0 0
    %97 = vperm.xlu0 %96, %v59
    %v98 = vpop.permute.xlu0 %97
    %101 = vset.pattern.permute.xlu0 0
    %102 = vperm.xlu0 %101, %v60
    %v103 = vpop.permute.xlu0 %102
    %106 = vset.pattern.permute.xlu0 0
    %107 = vperm.xlu0 %106, %v61
    %v108 = vpop.permute.xlu0 %107
    %111 = vset.pattern.permute.xlu0 0
    %112 = vperm.xlu0 %111, %v62
    %v113 = vpop.permute.xlu0 %112
    %116 = vset.pattern.permute.xlu0 0
    %117 = vperm.xlu0 %116, %v63
    %v118 = vpop.permute.xlu0 %117
    %121 = vset.pattern.permute.xlu0 0
    %122 = vperm.xlu0 %121, %v64
    %v123 = vpop.permute.xlu0 %122
    %126 = vset.pattern.permute.xlu0 0
    %127 = vperm.xlu0 %126, %v65
    %v128 = vpop.permute.xlu0 %127
    %131 = vset.pattern.permute.xlu0 0
    %132 = vperm.xlu0 %131, %v66
    %v133 = vpop.permute.xlu0 %132
    %136 = vset.pattern.permute.xlu0 0
    %137 = vperm.xlu0 %136, %v67
    %v138 = vpop.permute.xlu0 %137
    %141 = vset.pattern.permute.xlu0 0
    %142 = vperm.xlu0 %141, %v68
    %v143 = vpop.permute.xlu0 %142
    %146 = vset.pattern.permute.xlu0 0
    %147 = vperm.xlu0 %146, %v69
    %v148 = vpop.permute.xlu0 %147
    %v166 = vunpack.c.l.b16 %v38
    %v167 = vunpack.c.l.b16 %v39
    %v168 = vunpack.c.l.b16 %v40
    %v169 = vunpack.c.l.b16 %v41
    %v170 = vunpack.c.l.b16 %v42
    %v171 = vunpack.c.l.b16 %v43
    %v172 = vunpack.c.l.b16 %v44
    %v173 = vunpack.c.l.b16 %v45
    %v174 = vunpack.c.l.b16 %v46
    %v175 = vunpack.c.l.b16 %v47
    %v176 = vunpack.c.l.b16 %v48
    %v177 = vunpack.c.l.b16 %v49
    %v178 = vunpack.c.l.b16 %v50
    %v179 = vunpack.c.l.b16 %v51
    %v180 = vunpack.c.l.b16 %v52
    %v181 = vunpack.c.l.b16 %v53
    %v182 = vpack.c.b16 %v167, %v166
    %v183 = vpack.c.b16 %v169, %v168
    %v184 = vpack.c.b16 %v171, %v170
    %v185 = vpack.c.b16 %v173, %v172
    %v186 = vpack.c.b16 %v175, %v174
    %v187 = vpack.c.b16 %v177, %v176
    %v188 = vpack.c.b16 %v179, %v178
    %v189 = vpack.c.b16 %v181, %v180
    %v192 = vunpack.c.l.b16 %v36
    %v193 = vunpack.c.l.b16 %v37
    %v194 = vpack.c.b16 %v193, %v192
    %vm195 = vcmask 80896
    %v197 = vsel %vm195, %v182, 0
    %v200 = vsel %vm195, %v183, 0
    %v203 = vsel %vm195, %v184, 0
    %v206 = vsel %vm195, %v185, 0
    %v209 = vsel %vm195, %v186, 0
    %v212 = vsel %vm195, %v187, 0
    %v215 = vsel %vm195, %v188, 0
    %v218 = vsel %vm195, %v189, 0
    %vm220 = vcmask 1044480
    %v222 = vsel %vm220, %v194, 0
    %224 = vmatprep.subr.bf16.mxu0 0
    %225 = vmatpush1.bf16.msra.mxu0 0
    %226 = vmatprep.subr.bf16.mxu0 0
    %227 = vmatpush1.bf16.msra.mxu0 0
    %228 = vmatprep.subr.bf16.mxu0 0
    %229 = vmatpush1.bf16.msra.mxu0 0
    %230 = vmatprep.subr.bf16.mxu0 0
    %231 = vmatpush1.bf16.msra.mxu0 0
    %232 = vmatprep.subr.bf16.mxu0 0
    %233 = vmatpush1.bf16.msra.mxu0 0
    %234 = vmatprep.subr.bf16.mxu0 0
    %235 = vmatpush1.bf16.msra.mxu0 0
    %236 = vmatprep.subr.bf16.mxu0 0
    %237 = vmatpush1.bf16.msra.mxu0 0
    %238 = vmatprep.subr.bf16.mxu0 0
    %239 = vmatpush1.bf16.msra.mxu0 %v222
    %240 = vmatprep.subr.bf16.mxu0 0
    %241 = vmatpush2.bf16.msra.mxu0 0
    %242 = vmatprep.subr.bf16.mxu0 0
    %243 = vmatpush2.bf16.msra.mxu0 0
    %244 = vmatprep.subr.bf16.mxu0 0
    %245 = vmatpush2.bf16.msra.mxu0 0
    %246 = vmatprep.subr.bf16.mxu0 0
    %247 = vmatpush2.bf16.msra.mxu0 0
    %248 = vmatprep.subr.bf16.mxu0 0
    %249 = vmatpush2.bf16.msra.mxu0 0
    %250 = vmatprep.subr.bf16.mxu0 0
    %251 = vmatpush2.bf16.msra.mxu0 0
    %252 = vmatprep.subr.bf16.mxu0 0
    %253 = vmatpush2.bf16.msra.mxu0 0
    %254 = vmatprep.subr.bf16.mxu0 0
    %255 = vmatpush2.bf16.msra.mxu0 0
    %256 = vmatprep.mubr.bf16.mxu0 0
    %257 = vmatmul.mubr.bf16.gmra.mxu0 %v197
    %v258 = vpop.f32.mrf.mxu0
    %v259 = vadd.f32 %v73, %v258
    %v260 = vpop.f32.mrf.mxu0
    %v261 = vpop.f32.mrf.mxu0
    %v262 = vadd.f32 %v78, %v261
    %v263 = vpop.f32.mrf.mxu0
    %264 = vmatprep.mubr.bf16.mxu0 0
    %265 = vmatmul.mubr.bf16.gmra.mxu0 %v200
    %v266 = vpop.f32.mrf.mxu0
    %v267 = vadd.f32 %v83, %v266
    %v268 = vpop.f32.mrf.mxu0
    %v269 = vpop.f32.mrf.mxu0
    %v270 = vadd.f32 %v88, %v269
    %v271 = vpop.f32.mrf.mxu0
    %272 = vmatprep.mubr.bf16.mxu0 0
    %273 = vmatmul.mubr.bf16.gmra.mxu0 %v203
    %v274 = vpop.f32.mrf.mxu0
    %v275 = vadd.f32 %v93, %v274
    %v276 = vpop.f32.mrf.mxu0
    %v277 = vpop.f32.mrf.mxu0
    %v278 = vadd.f32 %v98, %v277
    %v279 = vpop.f32.mrf.mxu0
    %280 = vmatprep.mubr.bf16.mxu0 0
    %281 = vmatmul.mubr.bf16.gmra.mxu0 %v206
    %v282 = vpop.f32.mrf.mxu0
    %v283 = vadd.f32 %v103, %v282
    %v284 = vpop.f32.mrf.mxu0
    %v285 = vpop.f32.mrf.mxu0
    %v286 = vadd.f32 %v108, %v285
    %v287 = vpop.f32.mrf.mxu0
    %288 = vmatprep.mubr.bf16.mxu0 0
    %289 = vmatmul.mubr.bf16.gmra.mxu0 %v209
    %v290 = vpop.f32.mrf.mxu0
    %v291 = vadd.f32 %v113, %v290
    %v292 = vpop.f32.mrf.mxu0
    %v293 = vpop.f32.mrf.mxu0
    %v294 = vadd.f32 %v118, %v293
    %v295 = vpop.f32.mrf.mxu0
    %296 = vmatprep.mubr.bf16.mxu0 0
    %297 = vmatmul.mubr.bf16.gmra.mxu0 %v212
    %v298 = vpop.f32.mrf.mxu0
    %v299 = vadd.f32 %v123, %v298
    %v300 = vpop.f32.mrf.mxu0
    %v301 = vpop.f32.mrf.mxu0
    %v302 = vadd.f32 %v128, %v301
    %v303 = vpop.f32.mrf.mxu0
    %304 = vmatprep.mubr.bf16.mxu0 0
    %305 = vmatmul.mubr.bf16.gmra.mxu0 %v215
    %v306 = vpop.f32.mrf.mxu0
    %v307 = vadd.f32 %v133, %v306
    %v308 = vpop.f32.mrf.mxu0
    %v309 = vpop.f32.mrf.mxu0
    %v310 = vadd.f32 %v138, %v309
    %v311 = vpop.f32.mrf.mxu0
    %312 = vmatprep.mubr.bf16.mxu0 0
    %313 = vmatmul.mubr.bf16.gmra.mxu0 %v218
    %v314 = vpop.f32.mrf.mxu0
    %v315 = vadd.f32 %v143, %v314
    %v316 = vpop.f32.mrf.mxu0
    %v317 = vpop.f32.mrf.mxu0
    %v318 = vadd.f32 %v148, %v317
    %v319 = vpop.f32.mrf.mxu0
    %320 = vdwg.mxu0
    %v321 = vmax.f32 %v259, 0.0
    %v322 = vmax.f32 %v262, 0.0
    %v323 = vmax.f32 %v267, 0.0
    %v324 = vmax.f32 %v270, 0.0
    %v325 = vmax.f32 %v275, 0.0
    %v326 = vmax.f32 %v278, 0.0
    %v327 = vmax.f32 %v283, 0.0
    %v328 = vmax.f32 %v286, 0.0
    %v329 = vmax.f32 %v291, 0.0
    %v330 = vmax.f32 %v294, 0.0
    %v331 = vmax.f32 %v299, 0.0
    %v332 = vmax.f32 %v302, 0.0
    %v333 = vmax.f32 %v307, 0.0
    %v334 = vmax.f32 %v310, 0.0
    %v335 = vmax.f32 %v315, 0.0
    %v336 = vmax.f32 %v318, 0.0
    %v337 = vpack.c.bf16 %v322, %v321
    %v338 = vpack.c.bf16 %v324, %v323
    %v339 = vpack.c.bf16 %v326, %v325
    %v340 = vpack.c.bf16 %v328, %v327
    %v341 = vpack.c.bf16 %v330, %v329
    %v342 = vpack.c.bf16 %v332, %v331
    %v343 = vpack.c.bf16 %v334, %v333
    %v344 = vpack.c.bf16 %v336, %v335
    %v345 = vld [vmem:[%s3] sm:$0xf]
    %v346 = vld [vmem:[%s3 + $0x4] sm:$0xf]
    %v347 = vld [vmem:[%s3 + $0x8] sm:$0xf]
    %v348 = vld [vmem:[%s3 + $0xc] sm:$0xf]
    %v349 = vld [vmem:[%s3 + $0x10] sm:$0xf]
    %v350 = vld [vmem:[%s3 + $0x14] sm:$0xf]
    %v351 = vld [vmem:[%s3 + $0x18] sm:$0xf]
    %v352 = vld [vmem:[%s3 + $0x1c] sm:$0xf]
    %v353 = vld [vmem:[%s4] sm:$0xff]
    %v354 = vld [vmem:[%s4 + $0x8] sm:$0xff]
    %v355 = vld [vmem:[%s4 + $0x10] sm:$0xff]
    %v356 = vld [vmem:[%s4 + $0x18] sm:$0xff]
    %v357 = vld [vmem:[%s4 + $0x20] sm:$0xff]
    %v358 = vld [vmem:[%s4 + $0x28] sm:$0xff]
    %v359 = vld [vmem:[%s4 + $0x30] sm:$0xff]
    %v360 = vld [vmem:[%s4 + $0x38] sm:$0xff]
    %362 = vset.pattern.permute.xlu0 0
    %363 = vperm.xlu0 %362, %v353
    %v364 = vpop.permute.xlu0 %363
    %367 = vset.pattern.permute.xlu0 0
    %368 = vperm.xlu0 %367, %v354
    %v369 = vpop.permute.xlu0 %368
    %372 = vset.pattern.permute.xlu0 0
    %373 = vperm.xlu0 %372, %v355
    %v374 = vpop.permute.xlu0 %373
    %377 = vset.pattern.permute.xlu0 0
    %378 = vperm.xlu0 %377, %v356
    %v379 = vpop.permute.xlu0 %378
    %382 = vset.pattern.permute.xlu0 0
    %383 = vperm.xlu0 %382, %v357
    %v384 = vpop.permute.xlu0 %383
    %387 = vset.pattern.permute.xlu0 0
    %388 = vperm.xlu0 %387, %v358
    %v389 = vpop.permute.xlu0 %388
    %392 = vset.pattern.permute.xlu0 0
    %393 = vperm.xlu0 %392, %v359
    %v394 = vpop.permute.xlu0 %393
    %397 = vset.pattern.permute.xlu0 0
    %398 = vperm.xlu0 %397, %v360
    %v399 = vpop.permute.xlu0 %398
    %v409 = vunpack.c.l.b16 %v345
    %v410 = vunpack.c.l.b16 %v346
    %v411 = vunpack.c.l.b16 %v347
    %v412 = vunpack.c.l.b16 %v348
    %v413 = vunpack.c.l.b16 %v349
    %v414 = vunpack.c.l.b16 %v350
    %v415 = vunpack.c.l.b16 %v351
    %v416 = vunpack.c.l.b16 %v352
    %v417 = vpack.c.b16 %v410, %v409
    %v418 = vpack.c.b16 %v412, %v411
    %v419 = vpack.c.b16 %v414, %v413
    %v420 = vpack.c.b16 %v416, %v415
    %425 = vmatprep.subr.bf16.mxu0 0
    %426 = vmatpush1.bf16.msra.mxu0 %v344
    %427 = vmatprep.subr.bf16.mxu0 0
    %428 = vmatpush1.bf16.msra.mxu0 %v343
    %429 = vmatprep.subr.bf16.mxu0 0
    %430 = vmatpush1.bf16.msra.mxu0 %v342
    %431 = vmatprep.subr.bf16.mxu0 0
    %432 = vmatpush1.bf16.msra.mxu0 %v341
    %433 = vmatprep.subr.bf16.mxu0 0
    %434 = vmatpush1.bf16.msra.mxu0 %v340
    %435 = vmatprep.subr.bf16.mxu0 0
    %436 = vmatpush1.bf16.msra.mxu0 %v339
    %437 = vmatprep.subr.bf16.mxu0 0
    %438 = vmatpush1.bf16.msra.mxu0 %v338
    %439 = vmatprep.subr.bf16.mxu0 0
    %440 = vmatpush1.bf16.msra.mxu0 %v337
    %441 = vmatprep.subr.bf16.mxu0 0
    %442 = vmatpush2.bf16.msra.mxu0 0
    %443 = vmatprep.subr.bf16.mxu0 0
    %444 = vmatpush2.bf16.msra.mxu0 0
    %445 = vmatprep.subr.bf16.mxu0 0
    %446 = vmatpush2.bf16.msra.mxu0 0
    %447 = vmatprep.subr.bf16.mxu0 0
    %448 = vmatpush2.bf16.msra.mxu0 0
    %449 = vmatprep.subr.bf16.mxu0 0
    %450 = vmatpush2.bf16.msra.mxu0 0
    %451 = vmatprep.subr.bf16.mxu0 0
    %452 = vmatpush2.bf16.msra.mxu0 0
    %453 = vmatprep.subr.bf16.mxu0 0
    %454 = vmatpush2.bf16.msra.mxu0 0
    %455 = vmatprep.subr.bf16.mxu0 0
    %456 = vmatpush2.bf16.msra.mxu0 0
    %457 = vmatprep.mubr.bf16.mxu0 0
    %458 = vmatmul.mubr.bf16.gmra.mxu0 %v417
    %v459 = vpop.f32.mrf.mxu0
    %v460 = vadd.f32 %v364, %v459
    %v461 = vpop.f32.mrf.mxu0
    %v462 = vpop.f32.mrf.mxu0
    %v463 = vadd.f32 %v369, %v462
    %v464 = vpop.f32.mrf.mxu0
    %465 = vmatprep.mubr.bf16.mxu0 0
    %466 = vmatmul.mubr.bf16.gmra.mxu0 %v418
    %v467 = vpop.f32.mrf.mxu0
    %v468 = vadd.f32 %v374, %v467
    %v469 = vpop.f32.mrf.mxu0
    %v470 = vpop.f32.mrf.mxu0
    %v471 = vadd.f32 %v379, %v470
    %v472 = vpop.f32.mrf.mxu0
    %473 = vmatprep.mubr.bf16.mxu0 0
    %474 = vmatmul.mubr.bf16.gmra.mxu0 %v419
    %v475 = vpop.f32.mrf.mxu0
    %v476 = vadd.f32 %v384, %v475
    %v477 = vpop.f32.mrf.mxu0
    %v478 = vpop.f32.mrf.mxu0
    %v479 = vadd.f32 %v389, %v478
    %v480 = vpop.f32.mrf.mxu0
    %481 = vmatprep.mubr.bf16.mxu0 0
    %482 = vmatmul.mubr.bf16.gmra.mxu0 %v420
    %v483 = vpop.f32.mrf.mxu0
    %v484 = vadd.f32 %v394, %v483
    %v485 = vpop.f32.mrf.mxu0
    %v486 = vpop.f32.mrf.mxu0
    %v487 = vadd.f32 %v399, %v486
    %v488 = vpop.f32.mrf.mxu0
    %489 = vdwg.mxu0
    %v490 = vmax.f32 %v460, 0.0
    %v491 = vmax.f32 %v463, 0.0
    %v492 = vmax.f32 %v468, 0.0
    %v493 = vmax.f32 %v471, 0.0
    %v494 = vmax.f32 %v476, 0.0
    %v495 = vmax.f32 %v479, 0.0
    %v496 = vmax.f32 %v484, 0.0
    %v497 = vmax.f32 %v487, 0.0
    %v498 = vpack.c.bf16 %v491, %v490
    %v499 = vpack.c.bf16 %v493, %v492
    %v500 = vpack.c.bf16 %v495, %v494
    %v501 = vpack.c.bf16 %v497, %v496
    %v502 = vld [vmem:[%s5] sm:$0xf]
    %v503 = vld [vmem:[%s6] sm:$0xff]
    %505 = vset.pattern.permute.xlu0 0
    %506 = vperm.xlu0 %505, %v503
    %v507 = vpop.permute.xlu0 %506
    %vm509 = vcmask 523264
    %v511 = vsel %vm509, %v502, 0
    %513 = vmatprep.subr.bf16.mxu0 0
    %514 = vmatpush1.bf16.msra.mxu0 0
    %515 = vmatprep.subr.bf16.mxu0 0
    %516 = vmatpush1.bf16.msra.mxu0 0
    %517 = vmatprep.subr.bf16.mxu0 0
    %518 = vmatpush1.bf16.msra.mxu0 0
    %519 = vmatprep.subr.bf16.mxu0 0
    %520 = vmatpush1.bf16.msra.mxu0 0
    %521 = vmatprep.subr.bf16.mxu0 0
    %522 = vmatpush1.bf16.msra.mxu0 %v501
    %523 = vmatprep.subr.bf16.mxu0 0
    %524 = vmatpush1.bf16.msra.mxu0 %v500
    %525 = vmatprep.subr.bf16.mxu0 0
    %526 = vmatpush1.bf16.msra.mxu0 %v499
    %527 = vmatprep.subr.bf16.mxu0 0
    %528 = vmatpush1.bf16.msra.mxu0 %v498
    %529 = vmatprep.subr.bf16.mxu0 0
    %530 = vmatpush2.bf16.msra.mxu0 0
    %531 = vmatprep.subr.bf16.mxu0 0
    %532 = vmatpush2.bf16.msra.mxu0 0
    %533 = vmatprep.subr.bf16.mxu0 0
    %534 = vmatpush2.bf16.msra.mxu0 0
    %535 = vmatprep.subr.bf16.mxu0 0
    %536 = vmatpush2.bf16.msra.mxu0 0
    %537 = vmatprep.subr.bf16.mxu0 0
    %538 = vmatpush2.bf16.msra.mxu0 0
    %539 = vmatprep.subr.bf16.mxu0 0
    %540 = vmatpush2.bf16.msra.mxu0 0
    %541 = vmatprep.subr.bf16.mxu0 0
    %542 = vmatpush2.bf16.msra.mxu0 0
    %543 = vmatprep.subr.bf16.mxu0 0
    %544 = vmatpush2.bf16.msra.mxu0 0
    %545 = vmatprep.mubr.bf16.mxu0 0
    %546 = vmatmul.mubr.bf16.gmra.mxu0 %v511
    %v547 = vpop.f32.mrf.mxu0
    %v548 = vadd.f32 %v507, %v547
    %v549 = vpop.f32.mrf.mxu0
    %v550 = vpop.f32.mrf.mxu0
    %v551 = vpop.f32.mrf.mxu0
    %552 = vdwg.mxu0
    %v553 = vmax.f32 %v548, 0.0
    %v554 = vld [vmem:[%s7] sm:$0xff]
    %556 = vset.pattern.permute.xlu0 0
    %557 = vperm.xlu0 %556, %v554
    %v558 = vpop.permute.xlu0 %557
    %v560 = vmul.f32 %v553, %v558
    %v561 = vrot.slane %v560, 4
    %v562 = vadd.f32 %v560, %v561
    %v563 = vrot.slane %v562, 2
    %v564 = vadd.f32 %v562, %v563
    %v565 = vrot.slane %v564, 1
    %v566 = vadd.f32 %v564, %v565
    %v567 = vld [vmem:[#allocation2] sm:$0x1]
    %569 = vset.pattern.permute.xlu0 0
    %570 = vperm.xlu0 %569, %v567
    %v571 = vpop.permute.xlu0 %570
    %v573 = vlaneseq
    %v574 = vshrl.u32 %v573, 7
    %v575 = vsub.s32 0, %v574
    %v576 = vrot.slane %v571, %v575
    %v577 = vadd.f32 %v566, %v576
    %v578 = vxor.u32 %v577, 2147483648
    %v579 = vmul.f32 %v578, 1.442695
    %v580 = vpow.pop %v579
    %v581 = vadd.f32 %v580, 1.0
    %v582 = vrcp.pop %v581
    %v583 = vmul.f32 1.0, %v582
    %584 = vst [vmem:[#allocation3] sm:$0x1] %v583
    // Predicated region
    $region38: #{tpu_custom_call.1} parent=1 // pred_check
      _
    $region39: #{tpu_custom_call.1} parent=1 // pred_check_branch
      %586 = sbr.rel (0) target = $region41
    $region40: #{tpu_custom_call.1} parent=1 // pred_region
      %s588 = ssub.s32 16, 16
      %589 = vsyncadd [#allocation4], %s588
      %s591 = sshll.u32 [#allocation3], 4
      %s592 = int_to_ptr.vmem [resolvable:$true] %s591
      %594 = dma.vmem_to_hbm [thread:$0]  %s592, 16, %s9, [#allocation4]
    $region41: #{tpu_custom_call.1} parent=1 // pred_fallthru
      _
    // Predicated region
    $region42: #{tpu_custom_call.1} parent=1 // pred_check
      _
    $region43: #{tpu_custom_call.1} parent=1 // pred_check_branch
      %596 = sbr.rel (0) target = $region45
    $region44: #{tpu_custom_call.1} parent=1 // pred_region
      %597 = dma.done [#allocation4], 16
    $region45: #{tpu_custom_call.1} parent=1 // pred_fallthru
      _
    %598 = vsyncpa [#allocation4], 1

</llo_original>
